<compile_context>
chip_gen: v5e
topology: v5e:2x2
jax: 0.10.0
libtpu: 0.0.40
codegen_flags: <defaults>
</compile_context>

<pallas_src>
import jax
import jax.numpy as jnp
from jax.experimental import pallas as pl
from jax.experimental.pallas import tpu as pltpu

LANE = 128      # vreg lane width: feature dims that feed the MXU pad to this
SUBLANE = 8     # vreg sublane width: batch tile is a multiple of this


def _round_up(n, m):
    return (n + m - 1) // m * m


def dqnet_kernel(x_ref, w1_ref, b1_ref, w2_ref, b2_ref, w3_ref, b3_ref, o_ref):
    # x: (TM, F) f32 (unpadded features); w1: (F, 128) bf16; w2/w3: (128, 128)
    # bf16 (zero lane-padded); b1/b2: (1, 128) f32; b3: (1, A) f32; out: (TM, A).
    # Dropout: identity (eval mode).
    x = x_ref[...].astype(jnp.bfloat16)            # in-kernel cast, hides under MXU

    # fc1 + relu (bf16 MXU matmul, f32 accumulate; bias/relu in f32)
    h1 = jnp.dot(x, w1_ref[...], preferred_element_type=jnp.float32)
    h1 = jnp.maximum(h1 + b1_ref[...], 0.0)

    # fc2 + relu
    h2 = jnp.dot(h1.astype(w2_ref.dtype), w2_ref[...],
                 preferred_element_type=jnp.float32)
    h2 = jnp.maximum(h2 + b2_ref[...], 0.0)

    # fc3 (no activation); keep the clean 128-wide MXU pass, then slice the
    # result to the true num_actions lanes so the HBM writeback is unpadded.
    out = jnp.dot(h2.astype(w3_ref.dtype), w3_ref[...],
                  preferred_element_type=jnp.float32)
    a = o_ref.shape[-1]
    o_ref[...] = (out[:, :a] + b3_ref[...]).astype(o_ref.dtype)


def dqnet_forward(x, params, *, block_batch=1024):
    """x: (B, F) float32. Returns (B, num_actions) float32."""
    w1, b1 = params["w1"], params["b1"]
    w2, b2 = params["w2"], params["b2"]
    w3, b3 = params["w3"], params["b3"]
    num_actions = params["num_actions"]

    B, F = x.shape
    h1_dim, h2_dim = 64, 28

    # Batch tiling: tile is a multiple of 8 (f32 sublane); no feature padding.
    tm = min(block_batch, _round_up(B, SUBLANE))
    b_pad = _round_up(B, tm)
    if b_pad != B:
        # Batch-row-only zero pad (cheap; rows are independent, sliced off below).
        x = jnp.pad(x, ((0, b_pad - B), (0, 0)))
    grid = (b_pad // tm,)

    # Advisory cost estimate (true, unpadded flop count / real HBM traffic).
    flops = 2 * B * (F * h1_dim + h1_dim * h2_dim + h2_dim * num_actions)
    bytes_accessed = (
        b_pad * F * 4
        + (w1.size + w2.size + w3.size) * 2
        + (b1.size + b2.size + b3.size) * 4
        + b_pad * num_actions * 4
    )

    const = lambda i: (0, 0)  # weights / biases: same block every grid step
    out_padded = pl.pallas_call(
        dqnet_kernel,
        out_shape=jax.ShapeDtypeStruct((b_pad, num_actions), jnp.float32),
        grid=grid,
        in_specs=[
            pl.BlockSpec((tm, F), lambda i: (i, 0)),   # x: tiled over batch,
                                                       # full (unpadded) feature dim
            pl.BlockSpec(w1.shape, const),
            pl.BlockSpec(b1.shape, const),
            pl.BlockSpec(w2.shape, const),
            pl.BlockSpec(b2.shape, const),
            pl.BlockSpec(w3.shape, const),
            pl.BlockSpec(b3.shape, const),
        ],
        out_specs=pl.BlockSpec((tm, num_actions), lambda i: (i, 0)),
        compiler_params=pltpu.CompilerParams(
            dimension_semantics=("parallel",)),
        cost_estimate=pl.CostEstimate(
            flops=flops, transcendentals=0, bytes_accessed=bytes_accessed),
    )(x, w1, b1, w2, b2, w3, b3)

    return out_padded[:B]


def init_dqnet_params(key, features, num_actions):
    """PyTorch nn.Linear-style init (U[-1/sqrt(fan_in), +1/sqrt(fan_in)]).
    fc1 keeps its true K (= features); K of fc2/fc3 and N of fc1/fc2/fc3 are
    zero lane-padded to 128 so intermediates map to clean MXU tiles. The fc3
    bias is unpadded (added after the in-kernel lane slice).
    Weights bf16 (MXU native), biases f32 (VPU-side add)."""
    def linear_init(k, fan_in, fan_out, *, pad_in, pad_out, pad_bias):
        kw, kb = jax.random.split(k)
        bound = 1.0 / jnp.sqrt(jnp.float32(fan_in))
        fi_p = _round_up(fan_in, LANE) if pad_in else fan_in
        fo_p = _round_up(fan_out, LANE) if pad_out else fan_out
        w = jnp.zeros((fi_p, fo_p), jnp.bfloat16)
        w = w.at[:fan_in, :fan_out].set(
            jax.random.uniform(kw, (fan_in, fan_out), jnp.float32,
                               -bound, bound).astype(jnp.bfloat16))
        bo_p = fo_p if pad_bias else fan_out
        b = jnp.zeros((1, bo_p), jnp.float32)
        b = b.at[:, :fan_out].set(
            jax.random.uniform(kb, (1, fan_out), jnp.float32, -bound, bound))
        return w, b

    k1, k2, k3 = jax.random.split(key, 3)
    w1, b1 = linear_init(k1, features, 64, pad_in=False, pad_out=True, pad_bias=True)
    w2, b2 = linear_init(k2, 64, 28, pad_in=True, pad_out=True, pad_bias=True)
    w3, b3 = linear_init(k3, 28, num_actions, pad_in=True, pad_out=True, pad_bias=False)
    return {"w1": w1, "b1": b1, "w2": w2, "b2": b2, "w3": w3, "b3": b3,
            "features": features, "num_actions": num_actions}


def dqnet_reference(x, params):
    """Pure-JAX reference with identical math (bf16-quantized weights/activations
    feeding f32-accumulated matmuls). Padded columns are zero, so they do not
    affect real outputs."""
    A = params["num_actions"]
    w1 = params["w1"].astype(jnp.float32)
    w2 = params["w2"].astype(jnp.float32)
    w3 = params["w3"].astype(jnp.float32)
    xb = x.astype(jnp.bfloat16).astype(jnp.float32)
    h1 = jnp.maximum(xb @ w1 + params["b1"], 0.0)
    h2 = jnp.maximum(h1.astype(jnp.bfloat16).astype(jnp.float32) @ w2
                     + params["b2"], 0.0)
    out = h2.astype(jnp.bfloat16).astype(jnp.float32) @ w3
    return out[:, :A] + params["b3"]


if __name__ == "__main__":
    key = jax.random.PRNGKey(0)
    k_x, k_p = jax.random.split(key)

    batch = 8
    features = 32      # input_shape[0]
    num_actions = 4

    x = jax.random.normal(k_x, (batch, features), dtype=jnp.float32)
    params = init_dqnet_params(k_p, features, num_actions)

    out = dqnet_forward(x, params)
    out = jax.block_until_ready(out)

    ref = dqnet_reference(x, params)
    assert out.shape == (batch, num_actions), out.shape
    assert jnp.allclose(out, ref, atol=1e-4, rtol=1e-4), "mismatch vs reference"

    print("KERNEL_OK")
</pallas_src>

<mosaic_0001>
module attributes {stable_mosaic.version = 11 : i64} {
  func.func @dqnet_kernel(%arg0: i32, %arg1: memref<8x32xf32, #tpu.memory_space<vmem>>, %arg2: memref<32x128xbf16, #tpu.memory_space<vmem>>, %arg3: memref<1x128xf32, #tpu.memory_space<vmem>>, %arg4: memref<128x128xbf16, #tpu.memory_space<vmem>>, %arg5: memref<1x128xf32, #tpu.memory_space<vmem>>, %arg6: memref<128x128xbf16, #tpu.memory_space<vmem>>, %arg7: memref<1x4xf32, #tpu.memory_space<vmem>>, %arg8: memref<8x4xf32, #tpu.memory_space<vmem>>) attributes {dimension_semantics = [#tpu.dimension_semantics<parallel>], iteration_bounds = array<i64: 1>, scalar_prefetch = 0 : i64, scratch_operands = 0 : i64, tpu.core_type = #tpu.core_type<tc>, window_params = [{transform_indices = @transform_0, window_bounds = array<i64: 8, 32>}, {pipeline_mode = #tpu.pipeline_mode<synchronous>, transform_indices = @transform_1, window_bounds = array<i64: 32, 128>}, {pipeline_mode = #tpu.pipeline_mode<synchronous>, transform_indices = @transform_2, window_bounds = array<i64: 1, 128>}, {pipeline_mode = #tpu.pipeline_mode<synchronous>, transform_indices = @transform_3, window_bounds = array<i64: 128, 128>}, {pipeline_mode = #tpu.pipeline_mode<synchronous>, transform_indices = @transform_4, window_bounds = array<i64: 1, 128>}, {pipeline_mode = #tpu.pipeline_mode<synchronous>, transform_indices = @transform_5, window_bounds = array<i64: 128, 128>}, {pipeline_mode = #tpu.pipeline_mode<synchronous>, transform_indices = @transform_6, window_bounds = array<i64: 1, 4>}, {transform_indices = @transform_7, window_bounds = array<i64: 8, 4>}]} {
    %c0 = arith.constant 0 : index
    %c0_0 = arith.constant 0 : index
    %0 = vector.load %arg1[%c0, %c0_0] : memref<8x32xf32, #tpu.memory_space<vmem>>, vector<8x32xf32>
    %1 = arith.truncf %0 : vector<8x32xf32> to vector<8x32xbf16>
    %c0_1 = arith.constant 0 : index
    %c0_2 = arith.constant 0 : index
    %2 = vector.load %arg2[%c0_1, %c0_2] : memref<32x128xbf16, #tpu.memory_space<vmem>>, vector<32x128xbf16>
    %cst = arith.constant dense<0.000000e+00> : vector<8x128xf32>
    %3 = tpu.matmul %1, %2, %cst {dimension_numbers = #tpu.dot_dimension_numbers<[1], [0], [0], [1], [0, 0, 1, 1], [], []>} : vector<8x32xbf16>, vector<32x128xbf16>, vector<8x128xf32> -> vector<8x128xf32>
    %c0_3 = arith.constant 0 : index
    %c0_4 = arith.constant 0 : index
    %4 = vector.load %arg3[%c0_3, %c0_4] : memref<1x128xf32, #tpu.memory_space<vmem>>, vector<1x128xf32>
    %5 = vector.broadcast %4 : vector<1x128xf32> to vector<8x128xf32>
    %6 = arith.addf %3, %5 : vector<8x128xf32>
    %cst_5 = arith.constant 0.000000e+00 : f32
    %7 = vector.broadcast %cst_5 : f32 to vector<8x128xf32>
    %8 = arith.maximumf %6, %7 : vector<8x128xf32>
    %9 = arith.truncf %8 : vector<8x128xf32> to vector<8x128xbf16>
    %c0_6 = arith.constant 0 : index
    %c0_7 = arith.constant 0 : index
    %10 = vector.load %arg4[%c0_6, %c0_7] : memref<128x128xbf16, #tpu.memory_space<vmem>>, vector<128x128xbf16>
    %cst_8 = arith.constant dense<0.000000e+00> : vector<8x128xf32>
    %11 = tpu.matmul %9, %10, %cst_8 {dimension_numbers = #tpu.dot_dimension_numbers<[1], [0], [0], [1], [0, 0, 1, 1], [], []>} : vector<8x128xbf16>, vector<128x128xbf16>, vector<8x128xf32> -> vector<8x128xf32>
    %c0_9 = arith.constant 0 : index
    %c0_10 = arith.constant 0 : index
    %12 = vector.load %arg5[%c0_9, %c0_10] : memref<1x128xf32, #tpu.memory_space<vmem>>, vector<1x128xf32>
    %13 = vector.broadcast %12 : vector<1x128xf32> to vector<8x128xf32>
    %14 = arith.addf %11, %13 : vector<8x128xf32>
    %cst_11 = arith.constant 0.000000e+00 : f32
    %15 = vector.broadcast %cst_11 : f32 to vector<8x128xf32>
    %16 = arith.maximumf %14, %15 : vector<8x128xf32>
    %17 = arith.truncf %16 : vector<8x128xf32> to vector<8x128xbf16>
    %c0_12 = arith.constant 0 : index
    %c0_13 = arith.constant 0 : index
    %18 = vector.load %arg6[%c0_12, %c0_13] : memref<128x128xbf16, #tpu.memory_space<vmem>>, vector<128x128xbf16>
    %cst_14 = arith.constant dense<0.000000e+00> : vector<8x128xf32>
    %19 = tpu.matmul %17, %18, %cst_14 {dimension_numbers = #tpu.dot_dimension_numbers<[1], [0], [0], [1], [0, 0, 1, 1], [], []>} : vector<8x128xbf16>, vector<128x128xbf16>, vector<8x128xf32> -> vector<8x128xf32>
    %20 = vector.extract_strided_slice %19 {offsets = [0, 0], sizes = [8, 4], strides = [1, 1]} : vector<8x128xf32> to vector<8x4xf32>
    %c0_15 = arith.constant 0 : index
    %c0_16 = arith.constant 0 : index
    %21 = vector.load %arg7[%c0_15, %c0_16] : memref<1x4xf32, #tpu.memory_space<vmem>>, vector<1x4xf32>
    %22 = vector.broadcast %21 : vector<1x4xf32> to vector<8x4xf32>
    %23 = arith.addf %20, %22 : vector<8x4xf32>
    %c0_17 = arith.constant 0 : index
    %c0_18 = arith.constant 0 : index
    %24 = vector.load %arg8[%c0_17, %c0_18] : memref<8x4xf32, #tpu.memory_space<vmem>>, vector<8x4xf32>
    tpu.vector_store %arg8[%c0_17, %c0_18], %23 {strides = array<i32>} : memref<8x4xf32, #tpu.memory_space<vmem>>, vector<8x4xf32>,
    return
  }
  func.func @transform_0(%arg0: i32) -> (i32, i32) {
    %c0_i32 = arith.constant 0 : i32
    %c0_i32_0 = arith.constant 0 : i32
    return %arg0, %c0_i32 : i32, i32
  }
  func.func @transform_1(%arg0: i32) -> (i32, i32) {
    %c0_i32 = arith.constant 0 : i32
    %c0_i32_0 = arith.constant 0 : i32
    %c0_i32_1 = arith.constant 0 : i32
    return %c0_i32, %c0_i32_0 : i32, i32
  }
  func.func @transform_2(%arg0: i32) -> (i32, i32) {
    %c0_i32 = arith.constant 0 : i32
    %c0_i32_0 = arith.constant 0 : i32
    %c0_i32_1 = arith.constant 0 : i32
    return %c0_i32, %c0_i32_0 : i32, i32
  }
  func.func @transform_3(%arg0: i32) -> (i32, i32) {
    %c0_i32 = arith.constant 0 : i32
    %c0_i32_0 = arith.constant 0 : i32
    %c0_i32_1 = arith.constant 0 : i32
    return %c0_i32, %c0_i32_0 : i32, i32
  }
  func.func @transform_4(%arg0: i32) -> (i32, i32) {
    %c0_i32 = arith.constant 0 : i32
    %c0_i32_0 = arith.constant 0 : i32
    %c0_i32_1 = arith.constant 0 : i32
    return %c0_i32, %c0_i32_0 : i32, i32
  }
  func.func @transform_5(%arg0: i32) -> (i32, i32) {
    %c0_i32 = arith.constant 0 : i32
    %c0_i32_0 = arith.constant 0 : i32
    %c0_i32_1 = arith.constant 0 : i32
    return %c0_i32, %c0_i32_0 : i32, i32
  }
  func.func @transform_6(%arg0: i32) -> (i32, i32) {
    %c0_i32 = arith.constant 0 : i32
    %c0_i32_0 = arith.constant 0 : i32
    %c0_i32_1 = arith.constant 0 : i32
    return %c0_i32, %c0_i32_0 : i32, i32
  }
  func.func @transform_7(%arg0: i32) -> (i32, i32) {
    %c0_i32 = arith.constant 0 : i32
    %c0_i32_0 = arith.constant 0 : i32
    return %arg0, %c0_i32 : i32, i32
  }
}

</mosaic_0001>

<llo_original>
// kernel: tpu_custom_call.1
$region0: #{tpu_custom_call.1}
  #allocation0 [shape = 'u32[]', space=smem, size = 0x4, offset = 0x4, fixed_abs, tag = 'smem constant byte address 0x4 - core index']
  #allocation1 [shape = 'u32[72,128]{1,0:T(1,128)}', space=vmem, size = 0x9000, scoped, tag = 'internal scratch']
  %s0 = inlined_call_operand.hbm [shape: f32[8,32], index: 0, kind: input, shape index: {}]
  %s1 = inlined_call_operand.hbm [shape: bf16[32,128], index: 1, kind: input, shape index: {}]
  %s2 = inlined_call_operand.vmem [shape: f32[1,128], index: 2, kind: input, shape index: {}]
  %s3 = inlined_call_operand.hbm [shape: bf16[128,128], index: 3, kind: input, shape index: {}]
  %s4 = inlined_call_operand.vmem [shape: f32[1,128], index: 4, kind: input, shape index: {}]
  %s5 = inlined_call_operand.hbm [shape: bf16[128,128], index: 5, kind: input, shape index: {}]
  %s6 = inlined_call_operand.vmem [shape: f32[1,4], index: 6, kind: input, shape index: {}]
  %s7 = inlined_call_operand.vmem [shape: f32[8,4], index: 7, kind: output, shape index: {}]
  %s8 = sld [smem:[#allocation0]]
  $region54: #{tpu_custom_call.1} parent=0
    _
  %s10 = ssub.s32 1, %s8
  %s11 = scalar_select 0, %s10, %s8
  $region1: #{tpu_custom_call.1} parent=0
    #allocation2 [shape = 'u8[4096]{0}', space=vmem, size = 0x1000, scoped, tag = 'input window, operand 0, single buffered']
    #allocation3 [shape = 's32[1]{0}', space=sflag, size = 0x4, scoped, tag = 'scoped memory for tpu_custom_call.1']
    #allocation4 [shape = 'u8[8192]{0}', space=vmem, size = 0x2000, scoped, tag = 'input window, operand 1, single buffered']
    #allocation5 [shape = 's32[1]{0}', space=sflag, size = 0x4, scoped, tag = 'scoped memory for tpu_custom_call.1']
    #allocation6 [shape = 'u8[32768]{0}', space=vmem, size = 0x8000, scoped, tag = 'input window, operand 3, single buffered']
    #allocation7 [shape = 'u8[32768]{0}', space=vmem, size = 0x8000, scoped, tag = 'input window, operand 5, single buffered']
    #allocation8 [shape = 's32[1]{0}', space=sflag, size = 0x4, scoped, tag = 'scoped memory for tpu_custom_call.1']
    %12 = vsyncpa [#allocation3], 0
    %13 = vsyncpa [#allocation5], 0
    %14 = vsyncpa [#allocation8], 0
    // Predicated region
    $region2: #{tpu_custom_call.1} parent=1 // pred_check
      _
    $region3: #{tpu_custom_call.1} parent=1 // pred_check_branch
      %16 = sbr.rel (0) target = $region5
    $region4: #{tpu_custom_call.1} parent=1 // pred_region
      %18 = vsyncadd [#allocation3], 0
      %s20 = sshll.u32 %s0, 4
      %s21 = int_to_ptr.hbm [resolvable:$true] %s20
      %s22 = sshll.u32 [#allocation2], 4
      %s23 = int_to_ptr.vmem [resolvable:$true] %s22
      %25 = dma.hbm_to_vmem [thread:$0]  %s21, 128, %s23, [#allocation3]
    $region5: #{tpu_custom_call.1} parent=1 // pred_fallthru
      _
    // Predicated region
    $region6: #{tpu_custom_call.1} parent=1 // pred_check
      _
    $region7: #{tpu_custom_call.1} parent=1 // pred_check_branch
      %27 = sbr.rel (0) target = $region9
    $region8: #{tpu_custom_call.1} parent=1 // pred_region
      %29 = vsyncadd [#allocation5], 0
      %s30 = sshll.u32 %s1, 4
      %s31 = int_to_ptr.hbm [resolvable:$true] %s30
      %s32 = sshll.u32 [#allocation4], 4
      %s33 = int_to_ptr.vmem [resolvable:$true] %s32
      %38 = dma.hbm_to_vmem [thread:$0]  %s31, 256, %s33, [#allocation5], 64, 64, 4
    $region9: #{tpu_custom_call.1} parent=1 // pred_fallthru
      _
    // Predicated region
    $region10: #{tpu_custom_call.1} parent=1 // pred_check
      _
    $region11: #{tpu_custom_call.1} parent=1 // pred_check_branch
      %40 = sbr.rel (0) target = $region13
    $region12: #{tpu_custom_call.1} parent=1 // pred_region
      _
    $region13: #{tpu_custom_call.1} parent=1 // pred_fallthru
      _
    // Predicated region
    $region14: #{tpu_custom_call.1} parent=1 // pred_check
      _
    $region15: #{tpu_custom_call.1} parent=1 // pred_check_branch
      %42 = sbr.rel (0) target = $region17
    $region16: #{tpu_custom_call.1} parent=1 // pred_region
      %44 = vsyncadd [#allocation5], 0
      %s45 = sshll.u32 %s3, 4
      %s46 = int_to_ptr.hbm [resolvable:$true] %s45
      %s47 = sshll.u32 [#allocation6], 4
      %s48 = int_to_ptr.vmem [resolvable:$true] %s47
      %53 = dma.hbm_to_vmem [thread:$0]  %s46, 1024, %s48, [#allocation5], 64, 64, 4
    $region17: #{tpu_custom_call.1} parent=1 // pred_fallthru
      _
    // Predicated region
    $region18: #{tpu_custom_call.1} parent=1 // pred_check
      _
    $region19: #{tpu_custom_call.1} parent=1 // pred_check_branch
      %55 = sbr.rel (0) target = $region21
    $region20: #{tpu_custom_call.1} parent=1 // pred_region
      _
    $region21: #{tpu_custom_call.1} parent=1 // pred_fallthru
      _
    // Predicated region
    $region22: #{tpu_custom_call.1} parent=1 // pred_check
      _
    $region23: #{tpu_custom_call.1} parent=1 // pred_check_branch
      %57 = sbr.rel (0) target = $region25
    $region24: #{tpu_custom_call.1} parent=1 // pred_region
      %59 = vsyncadd [#allocation8], 0
      %s60 = sshll.u32 %s5, 4
      %s61 = int_to_ptr.hbm [resolvable:$true] %s60
      %s62 = sshll.u32 [#allocation7], 4
      %s63 = int_to_ptr.vmem [resolvable:$true] %s62
      %68 = dma.hbm_to_vmem [thread:$0]  %s61, 1024, %s63, [#allocation8], 64, 64, 4
    $region25: #{tpu_custom_call.1} parent=1 // pred_fallthru
      _
    // Predicated region
    $region26: #{tpu_custom_call.1} parent=1 // pred_check
      _
    $region27: #{tpu_custom_call.1} parent=1 // pred_check_branch
      %70 = sbr.rel (0) target = $region29
    $region28: #{tpu_custom_call.1} parent=1 // pred_region
      _
    $region29: #{tpu_custom_call.1} parent=1 // pred_fallthru
      _
    // Predicated region
    $region30: #{tpu_custom_call.1} parent=1 // pred_check
      _
    $region31: #{tpu_custom_call.1} parent=1 // pred_check_branch
      %72 = sbr.rel (0) target = $region33
    $region32: #{tpu_custom_call.1} parent=1 // pred_region
      %74 = dma.done [#allocation3], 128
    $region33: #{tpu_custom_call.1} parent=1 // pred_fallthru
      _
    // Predicated region
    $region34: #{tpu_custom_call.1} parent=1 // pred_check
      _
    $region35: #{tpu_custom_call.1} parent=1 // pred_check_branch
      %76 = sbr.rel (0) target = $region37
    $region36: #{tpu_custom_call.1} parent=1 // pred_region
      %78 = dma.done [#allocation5], 256
    $region37: #{tpu_custom_call.1} parent=1 // pred_fallthru
      _
    // Predicated region
    $region38: #{tpu_custom_call.1} parent=1 // pred_check
      _
    $region39: #{tpu_custom_call.1} parent=1 // pred_check_branch
      %80 = sbr.rel (0) target = $region41
    $region40: #{tpu_custom_call.1} parent=1 // pred_region
      %82 = dma.done [#allocation5], 1024
    $region41: #{tpu_custom_call.1} parent=1 // pred_fallthru
      _
    // Predicated region
    $region42: #{tpu_custom_call.1} parent=1 // pred_check
      _
    $region43: #{tpu_custom_call.1} parent=1 // pred_check_branch
      %84 = sbr.rel (0) target = $region45
    $region44: #{tpu_custom_call.1} parent=1 // pred_region
      %86 = dma.done [#allocation8], 1024
    $region45: #{tpu_custom_call.1} parent=1 // pred_fallthru
      _
    %v88 = vld [vmem:[#allocation2] sm:$0xff]
    %v89 = vpack.c.bf16 %v88, %v88
    %v90 = vld [vmem:[#allocation4] sm:$0xf]
    %v91 = vld [vmem:[#allocation4 + $0x4] sm:$0xf]
    %v92 = vld [vmem:[#allocation4 + $0x8] sm:$0xf]
    %v93 = vld [vmem:[#allocation4 + $0xc] sm:$0xf]
    %v94 = vld [vmem:[%s2] sm:$0x1]
    %v96 = vperm.slane %v94, 0
    %v102 = vunpack.c.l.b16 %v90
    %v103 = vunpack.c.l.b16 %v91
    %v104 = vunpack.c.l.b16 %v92
    %v105 = vunpack.c.l.b16 %v93
    %v106 = vpack.c.b16 %v103, %v102
    %v107 = vpack.c.b16 %v105, %v104
    %vm110 = vcmask 261120
    %v112 = vsel %vm110, %v89, 0
    %114 = vmatpush.bf16.msra.mxu0 0
    %115 = vmatpush.bf16.msra.mxu0 0
    %116 = vmatpush.bf16.msra.mxu0 0
    %117 = vmatpush.bf16.msra.mxu0 0
    %118 = vmatpush.bf16.msra.mxu0 0
    %119 = vmatpush.bf16.msra.mxu0 0
    %120 = vmatpush.bf16.msra.mxu0 %v107
    %121 = vmatpush.bf16.msra.mxu0 %v106
    %122 = vmatmul.bf16.gmra.mxu0 %v112
    %v123 = vpop.f32.mrf.mxu0
    %v124 = vadd.f32 %v96, %v123
    %v125 = vpop.f32.mrf.mxu0
    %126 = vdwg.mxu0
    %v127 = vmax.f32 %v124, 0.0
    %v128 = vpack.c.bf16 %v127, %v127
    %v129 = vld [vmem:[#allocation6] sm:$0xf]
    %v130 = vld [vmem:[#allocation6 + $0x4] sm:$0xf]
    %v131 = vld [vmem:[#allocation6 + $0x8] sm:$0xf]
    %v132 = vld [vmem:[#allocation6 + $0xc] sm:$0xf]
    %v133 = vld [vmem:[#allocation6 + $0x10] sm:$0xf]
    %v134 = vld [vmem:[#allocation6 + $0x14] sm:$0xf]
    %v135 = vld [vmem:[#allocation6 + $0x18] sm:$0xf]
    %v136 = vld [vmem:[#allocation6 + $0x1c] sm:$0xf]
    %v137 = vld [vmem:[#allocation6 + $0x20] sm:$0xf]
    %v138 = vld [vmem:[#allocation6 + $0x24] sm:$0xf]
    %v139 = vld [vmem:[#allocation6 + $0x28] sm:$0xf]
    %v140 = vld [vmem:[#allocation6 + $0x2c] sm:$0xf]
    %v141 = vld [vmem:[#allocation6 + $0x30] sm:$0xf]
    %v142 = vld [vmem:[#allocation6 + $0x34] sm:$0xf]
    %v143 = vld [vmem:[#allocation6 + $0x38] sm:$0xf]
    %v144 = vld [vmem:[#allocation6 + $0x3c] sm:$0xf]
    %v145 = vld [vmem:[%s4] sm:$0x1]
    %v147 = vperm.slane %v145, 0
    %v165 = vunpack.c.l.b16 %v129
    %v166 = vunpack.c.l.b16 %v130
    %v167 = vunpack.c.l.b16 %v131
    %v168 = vunpack.c.l.b16 %v132
    %v169 = vunpack.c.l.b16 %v133
    %v170 = vunpack.c.l.b16 %v134
    %v171 = vunpack.c.l.b16 %v135
    %v172 = vunpack.c.l.b16 %v136
    %v173 = vunpack.c.l.b16 %v137
    %v174 = vunpack.c.l.b16 %v138
    %v175 = vunpack.c.l.b16 %v139
    %v176 = vunpack.c.l.b16 %v140
    %v177 = vunpack.c.l.b16 %v141
    %v178 = vunpack.c.l.b16 %v142
    %v179 = vunpack.c.l.b16 %v143
    %v180 = vunpack.c.l.b16 %v144
    %v181 = vpack.c.b16 %v166, %v165
    %v182 = vpack.c.b16 %v168, %v167
    %v183 = vpack.c.b16 %v170, %v169
    %v184 = vpack.c.b16 %v172, %v171
    %v185 = vpack.c.b16 %v174, %v173
    %v186 = vpack.c.b16 %v176, %v175
    %v187 = vpack.c.b16 %v178, %v177
    %v188 = vpack.c.b16 %v180, %v179
    %197 = vmatpush.bf16.msra.mxu0 %v188
    %198 = vmatpush.bf16.msra.mxu0 %v187
    %199 = vmatpush.bf16.msra.mxu0 %v186
    %200 = vmatpush.bf16.msra.mxu0 %v185
    %201 = vmatpush.bf16.msra.mxu0 %v184
    %202 = vmatpush.bf16.msra.mxu0 %v183
    %203 = vmatpush.bf16.msra.mxu0 %v182
    %204 = vmatpush.bf16.msra.mxu0 %v181
    %205 = vmatmul.bf16.gmra.mxu0 %v128
    %v206 = vpop.f32.mrf.mxu0
    %v207 = vadd.f32 %v147, %v206
    %v208 = vpop.f32.mrf.mxu0
    %209 = vdwg.mxu0
    %v210 = vmax.f32 %v207, 0.0
    %v211 = vpack.c.bf16 %v210, %v210
    %v212 = vld [vmem:[#allocation7] sm:$0xf]
    %v213 = vld [vmem:[#allocation7 + $0x4] sm:$0xf]
    %v214 = vld [vmem:[#allocation7 + $0x8] sm:$0xf]
    %v215 = vld [vmem:[#allocation7 + $0xc] sm:$0xf]
    %v216 = vld [vmem:[#allocation7 + $0x10] sm:$0xf]
    %v217 = vld [vmem:[#allocation7 + $0x14] sm:$0xf]
    %v218 = vld [vmem:[#allocation7 + $0x18] sm:$0xf]
    %v219 = vld [vmem:[#allocation7 + $0x1c] sm:$0xf]
    %v220 = vld [vmem:[#allocation7 + $0x20] sm:$0xf]
    %v221 = vld [vmem:[#allocation7 + $0x24] sm:$0xf]
    %v222 = vld [vmem:[#allocation7 + $0x28] sm:$0xf]
    %v223 = vld [vmem:[#allocation7 + $0x2c] sm:$0xf]
    %v224 = vld [vmem:[#allocation7 + $0x30] sm:$0xf]
    %v225 = vld [vmem:[#allocation7 + $0x34] sm:$0xf]
    %v226 = vld [vmem:[#allocation7 + $0x38] sm:$0xf]
    %v227 = vld [vmem:[#allocation7 + $0x3c] sm:$0xf]
    %v244 = vunpack.c.l.b16 %v212
    %v245 = vunpack.c.l.b16 %v213
    %v246 = vunpack.c.l.b16 %v214
    %v247 = vunpack.c.l.b16 %v215
    %v248 = vunpack.c.l.b16 %v216
    %v249 = vunpack.c.l.b16 %v217
    %v250 = vunpack.c.l.b16 %v218
    %v251 = vunpack.c.l.b16 %v219
    %v252 = vunpack.c.l.b16 %v220
    %v253 = vunpack.c.l.b16 %v221
    %v254 = vunpack.c.l.b16 %v222
    %v255 = vunpack.c.l.b16 %v223
    %v256 = vunpack.c.l.b16 %v224
    %v257 = vunpack.c.l.b16 %v225
    %v258 = vunpack.c.l.b16 %v226
    %v259 = vunpack.c.l.b16 %v227
    %v260 = vpack.c.b16 %v245, %v244
    %v261 = vpack.c.b16 %v247, %v246
    %v262 = vpack.c.b16 %v249, %v248
    %v263 = vpack.c.b16 %v251, %v250
    %v264 = vpack.c.b16 %v253, %v252
    %v265 = vpack.c.b16 %v255, %v254
    %v266 = vpack.c.b16 %v257, %v256
    %v267 = vpack.c.b16 %v259, %v258
    %276 = vmatpush.bf16.msra.mxu0 %v267
    %277 = vmatpush.bf16.msra.mxu0 %v266
    %278 = vmatpush.bf16.msra.mxu0 %v265
    %279 = vmatpush.bf16.msra.mxu0 %v264
    %280 = vmatpush.bf16.msra.mxu0 %v263
    %281 = vmatpush.bf16.msra.mxu0 %v262
    %282 = vmatpush.bf16.msra.mxu0 %v261
    %283 = vmatpush.bf16.msra.mxu0 %v260
    %284 = vmatmul.bf16.gmra.mxu0 %v211
    %v285 = vpop.f32.mrf.mxu0
    %v286 = vadd.f32 0.0, %v285
    %v287 = vpop.f32.mrf.mxu0
    %288 = vdwg.mxu0
    %v289 = vld [vmem:[%s6] sm:$0x1]
    %v291 = vperm.slane %v289, 0
    %v293 = vadd.f32 %v286, %v291
    %vm294 = vcmask 31744
    %295 = vst.msk [vmem:[%s7] sm:$0xff] %vm294, %v293
    // Predicated region
    $region46: #{tpu_custom_call.1} parent=1 // pred_check
      _
    $region47: #{tpu_custom_call.1} parent=1 // pred_check_branch
      %297 = sbr.rel (0) target = $region49
    $region48: #{tpu_custom_call.1} parent=1 // pred_region
      _
    $region49: #{tpu_custom_call.1} parent=1 // pred_fallthru
      _
    // Predicated region
    $region50: #{tpu_custom_call.1} parent=1 // pred_check
      _
    $region51: #{tpu_custom_call.1} parent=1 // pred_check_branch
      %299 = sbr.rel (0) target = $region53
    $region52: #{tpu_custom_call.1} parent=1 // pred_region
      _
    $region53: #{tpu_custom_call.1} parent=1 // pred_fallthru
      _
    %300 = vsyncpa [#allocation3], 1
    %301 = vsyncpa [#allocation5], 1
    %302 = vsyncpa [#allocation8], 1

</llo_original>
